<compile_context>
chip_gen: v6e
topology: v6e:2x2x1
jax: 0.10.0
libtpu: 0.0.40
codegen_flags: <defaults>
</compile_context>

<pallas_src>
import numpy as np
import jax
import jax.numpy as jnp
from jax.experimental import pallas as pl
from jax.experimental.pallas import tpu as pltpu

_MiB = 1024 * 1024
_BUDGET = 28 * _MiB      # target double-buffered in+out footprint (all gens)
_HARD_CAP = 48 * _MiB    # stay well under v7x's 64 MiB physical VMEM


def _cdiv(a, b):
    return -(-a // b)


def _compute_pads(H, W, divisor, extra_pad):
    """Python-int replica of Pad.pad()'s l/r/t/b bookkeeping."""
    extra_pad_h, extra_pad_w = extra_pad
    w_add = (-W) % divisor
    h_add = (-H) % divisor
    l = extra_pad_w + int(np.ceil(w_add / 2.0))
    r = extra_pad_w + int(np.floor(w_add / 2.0))
    t = extra_pad_h + int(np.ceil(h_add / 2.0))
    b = extra_pad_h + int(np.floor(h_add / 2.0))
    return l, r, t, b


def _make_kernel(H, W, l, r, t, b):
    def kernel(x_ref, o_ref):
        # x_ref: (tn, tc, H, W)        input block
        # o_ref: (tn, tc, Hout, Wout)  padded output block

        def wpad_rows(h0, h1):
            """W-reflect-padded rows [h0, h1) of the input block, Wout wide.

            out col ow      <- in col l - ow      (left,  0 <= ow < l)
            out col l+W+j   <- in col W - 2 - j   (right, 0 <= j  < r)
            """
            body = x_ref[:, :, h0:h1, :]
            cols = [x_ref[:, :, h0:h1, i:i + 1] for i in range(l, 0, -1)]
            cols.append(body)
            cols += [x_ref[:, :, h0:h1, W - 2 - j:W - 1 - j] for j in range(r)]
            return jnp.concatenate(cols, axis=-1) if len(cols) > 1 else body

        # 1) Interior rows: compose full-Wout rows in registers and store them
        #    with a single wide, lane-0-aligned slab store.
        o_ref[:, :, t:t + H, :] = wpad_rows(0, H)

        # 2) Reflected top / bottom rows, already W-padded (so corners reflect
        #    in both axes), written as one full-width slab per side.
        if t > 0:    # out row oh     <- in row t - oh
            rows = [wpad_rows(t - oh, t - oh + 1) for oh in range(t)]
            o_ref[:, :, 0:t, :] = (
                jnp.concatenate(rows, axis=-2) if t > 1 else rows[0])
        if b > 0:    # out row t+H+j  <- in row H - 2 - j
            rows = [wpad_rows(H - 2 - j, H - 1 - j) for j in range(b)]
            o_ref[:, :, t + H:t + H + b, :] = (
                jnp.concatenate(rows, axis=-2) if b > 1 else rows[0])

    return kernel


def pad_reflect(x_nchw, divisor, extra_pad=(0, 0)):
    """Equivalent of Pad(divisor, extra_pad).forward(x) for NCHW input."""
    N, C, H, W = x_nchw.shape
    l, r, t, b = _compute_pads(H, W, divisor, extra_pad)
    # PyTorch 'reflect' requires pad < corresponding input dim.
    assert max(l, r) < W and max(t, b) < H, "reflect pad must be < input dim"

    if (l, r, t, b) == (0, 0, 0, 0):
        return x_nchw  # nothing to pad

    Hout, Wout = H + t + b, W + l + r
    itemsize = jnp.dtype(x_nchw.dtype).itemsize
    # Double-buffered (input + output) bytes per single (n, c) plane.
    per_nc = 2 * (H * W + Hout * Wout) * itemsize

    if per_nc > _HARD_CAP:
        # TODO(synk): H-tile huge single planes so they stay in Pallas instead
        # of falling back to XLA's reflect pad.
        return jnp.pad(x_nchw, ((0, 0), (0, 0), (t, b), (l, r)), mode="reflect")

    # Block over (N, C): as many channels (then images) per block as fit the
    # budget.  tc need not divide C: the cdiv grid's ragged tail block is
    # masked by Pallas on writeback.
    budget = max(_BUDGET, per_nc)
    tc = max(1, min(C, budget // per_nc))
    tn = max(1, min(N, budget // (per_nc * C))) if tc == C else 1
    # Guarantee >= 2 grid steps whenever possible so both v7x TensorCores get
    # work under dimension_semantics=("parallel", "parallel").
    if _cdiv(N, tn) * _cdiv(C, tc) < 2:
        if C >= 2:
            tc = _cdiv(C, 2)
        elif N >= 2:
            tn = _cdiv(N, 2)

    footprint = per_nc * tn * tc
    cp_kwargs = {}
    if footprint > 12 * _MiB:   # above/near v5e's 16 MiB default scoped VMEM
        cp_kwargs["vmem_limit_bytes"] = int(footprint + 4 * _MiB)

    in_bytes = N * C * H * W * itemsize
    out_bytes = N * C * Hout * Wout * itemsize

    out = pl.pallas_call(
        _make_kernel(H, W, l, r, t, b),
        out_shape=jax.ShapeDtypeStruct((N, C, Hout, Wout), x_nchw.dtype),
        grid=(_cdiv(N, tn), _cdiv(C, tc)),
        in_specs=[pl.BlockSpec((tn, tc, H, W), lambda n, c: (n, c, 0, 0))],
        out_specs=pl.BlockSpec((tn, tc, Hout, Wout), lambda n, c: (n, c, 0, 0)),
        compiler_params=pltpu.CompilerParams(
            dimension_semantics=("parallel", "parallel"), **cp_kwargs),
        cost_estimate=pl.CostEstimate(
            flops=0, transcendentals=0,
            bytes_accessed=in_bytes + out_bytes),
    )(x_nchw)
    return out


if __name__ == "__main__":
    key = jax.random.PRNGKey(0)

    def check(x, divisor, extra_pad):
        y = jax.block_until_ready(pad_reflect(x, divisor, extra_pad))
        l, r, t, b = _compute_pads(x.shape[2], x.shape[3], divisor, extra_pad)
        ref = jnp.pad(x, ((0, 0), (0, 0), (t, b), (l, r)), mode="reflect")
        assert y.shape == ref.shape and y.dtype == ref.dtype
        np.testing.assert_array_equal(np.asarray(y), np.asarray(ref))

    k1, k2, k3 = jax.random.split(key, 3)

    # H/W not divisible by divisor, plus extra symmetric padding.
    x1 = jax.random.normal(k1, (2, 4, 13, 15), dtype=jnp.float32)
    check(x1, divisor=8, extra_pad=(1, 2))

    # Already-divisible H/W: only the extra_pad reflection is exercised.
    x2 = jax.random.normal(k2, (2, 4, 16, 16), dtype=jnp.float32)
    check(x2, divisor=8, extra_pad=(2, 3))

    # Odd channel count (exercises the ragged tc tail block) and a one-sided
    # pad (r == 0 here).
    x3 = jax.random.normal(k3, (1, 3, 13, 15), dtype=jnp.float32)
    check(x3, divisor=4, extra_pad=(0, 0))

    print("KERNEL_OK")
</pallas_src>

<mosaic_0001>
module attributes {stable_mosaic.version = 11 : i64} {
  func.func @kernel(%arg0: i32, %arg1: i32, %arg2: memref<2x2x13x15xf32, #tpu.memory_space<vmem>>, %arg3: memref<2x2x18x20xf32, #tpu.memory_space<vmem>>) attributes {dimension_semantics = [#tpu.dimension_semantics<parallel>, #tpu.dimension_semantics<parallel>], iteration_bounds = array<i64: 1, 2>, scalar_prefetch = 0 : i64, scratch_operands = 0 : i64, tpu.core_type = #tpu.core_type<tc>, window_params = [{transform_indices = @transform_0, window_bounds = array<i64: 2, 2, 13, 15>}, {transform_indices = @transform_1, window_bounds = array<i64: 2, 2, 18, 20>}]} {
    %c0 = arith.constant 0 : index
    %c0_0 = arith.constant 0 : index
    %c0_1 = arith.constant 0 : index
    %c0_2 = arith.constant 0 : index
    %0 = vector.load %arg2[%c0, %c0_0, %c0_1, %c0_2] : memref<2x2x13x15xf32, #tpu.memory_space<vmem>>, vector<2x2x13x15xf32>
    %c0_3 = arith.constant 0 : index
    %c0_4 = arith.constant 0 : index
    %c0_5 = arith.constant 0 : index
    %c3 = arith.constant 3 : index
    %1 = vector.load %arg2[%c0_3, %c0_4, %c0_5, %c3] : memref<2x2x13x15xf32, #tpu.memory_space<vmem>>, vector<2x2x13x1xf32>
    %c0_6 = arith.constant 0 : index
    %c0_7 = arith.constant 0 : index
    %c0_8 = arith.constant 0 : index
    %c2 = arith.constant 2 : index
    %2 = vector.load %arg2[%c0_6, %c0_7, %c0_8, %c2] : memref<2x2x13x15xf32, #tpu.memory_space<vmem>>, vector<2x2x13x1xf32>
    %c0_9 = arith.constant 0 : index
    %c0_10 = arith.constant 0 : index
    %c0_11 = arith.constant 0 : index
    %c1 = arith.constant 1 : index
    %3 = vector.load %arg2[%c0_9, %c0_10, %c0_11, %c1] : memref<2x2x13x15xf32, #tpu.memory_space<vmem>>, vector<2x2x13x1xf32>
    %c0_12 = arith.constant 0 : index
    %c0_13 = arith.constant 0 : index
    %c0_14 = arith.constant 0 : index
    %c13 = arith.constant 13 : index
    %4 = vector.load %arg2[%c0_12, %c0_13, %c0_14, %c13] : memref<2x2x13x15xf32, #tpu.memory_space<vmem>>, vector<2x2x13x1xf32>
    %c0_15 = arith.constant 0 : index
    %c0_16 = arith.constant 0 : index
    %c0_17 = arith.constant 0 : index
    %c12 = arith.constant 12 : index
    %5 = vector.load %arg2[%c0_15, %c0_16, %c0_17, %c12] : memref<2x2x13x15xf32, #tpu.memory_space<vmem>>, vector<2x2x13x1xf32>
    %6 = tpu.concatenate %1, %2, %3, %0, %4, %5 in 3 : vector<2x2x13x1xf32>, vector<2x2x13x1xf32>, vector<2x2x13x1xf32>, vector<2x2x13x15xf32>, vector<2x2x13x1xf32>, vector<2x2x13x1xf32> -> vector<2x2x13x20xf32>
    %c0_18 = arith.constant 0 : index
    %c0_19 = arith.constant 0 : index
    %c3_20 = arith.constant 3 : index
    %c0_21 = arith.constant 0 : index
    %7 = vector.load %arg3[%c0_18, %c0_19, %c3_20, %c0_21] : memref<2x2x18x20xf32, #tpu.memory_space<vmem>>, vector<2x2x13x20xf32>
    tpu.vector_store %arg3[%c0_18, %c0_19, %c3_20, %c0_21], %6 {strides = array<i32>} : memref<2x2x18x20xf32, #tpu.memory_space<vmem>>, vector<2x2x13x20xf32>,
    %c0_22 = arith.constant 0 : index
    %c0_23 = arith.constant 0 : index
    %c3_24 = arith.constant 3 : index
    %c0_25 = arith.constant 0 : index
    %8 = vector.load %arg2[%c0_22, %c0_23, %c3_24, %c0_25] : memref<2x2x13x15xf32, #tpu.memory_space<vmem>>, vector<2x2x1x15xf32>
    %c0_26 = arith.constant 0 : index
    %c0_27 = arith.constant 0 : index
    %c3_28 = arith.constant 3 : index
    %c3_29 = arith.constant 3 : index
    %9 = vector.load %arg2[%c0_26, %c0_27, %c3_28, %c3_29] : memref<2x2x13x15xf32, #tpu.memory_space<vmem>>, vector<2x2x1x1xf32>
    %c0_30 = arith.constant 0 : index
    %c0_31 = arith.constant 0 : index
    %c3_32 = arith.constant 3 : index
    %c2_33 = arith.constant 2 : index
    %10 = vector.load %arg2[%c0_30, %c0_31, %c3_32, %c2_33] : memref<2x2x13x15xf32, #tpu.memory_space<vmem>>, vector<2x2x1x1xf32>
    %c0_34 = arith.constant 0 : index
    %c0_35 = arith.constant 0 : index
    %c3_36 = arith.constant 3 : index
    %c1_37 = arith.constant 1 : index
    %11 = vector.load %arg2[%c0_34, %c0_35, %c3_36, %c1_37] : memref<2x2x13x15xf32, #tpu.memory_space<vmem>>, vector<2x2x1x1xf32>
    %c0_38 = arith.constant 0 : index
    %c0_39 = arith.constant 0 : index
    %c3_40 = arith.constant 3 : index
    %c13_41 = arith.constant 13 : index
    %12 = vector.load %arg2[%c0_38, %c0_39, %c3_40, %c13_41] : memref<2x2x13x15xf32, #tpu.memory_space<vmem>>, vector<2x2x1x1xf32>
    %c0_42 = arith.constant 0 : index
    %c0_43 = arith.constant 0 : index
    %c3_44 = arith.constant 3 : index
    %c12_45 = arith.constant 12 : index
    %13 = vector.load %arg2[%c0_42, %c0_43, %c3_44, %c12_45] : memref<2x2x13x15xf32, #tpu.memory_space<vmem>>, vector<2x2x1x1xf32>
    %14 = tpu.concatenate %9, %10, %11, %8, %12, %13 in 3 : vector<2x2x1x1xf32>, vector<2x2x1x1xf32>, vector<2x2x1x1xf32>, vector<2x2x1x15xf32>, vector<2x2x1x1xf32>, vector<2x2x1x1xf32> -> vector<2x2x1x20xf32>
    %c0_46 = arith.constant 0 : index
    %c0_47 = arith.constant 0 : index
    %c2_48 = arith.constant 2 : index
    %c0_49 = arith.constant 0 : index
    %15 = vector.load %arg2[%c0_46, %c0_47, %c2_48, %c0_49] : memref<2x2x13x15xf32, #tpu.memory_space<vmem>>, vector<2x2x1x15xf32>
    %c0_50 = arith.constant 0 : index
    %c0_51 = arith.constant 0 : index
    %c2_52 = arith.constant 2 : index
    %c3_53 = arith.constant 3 : index
    %16 = vector.load %arg2[%c0_50, %c0_51, %c2_52, %c3_53] : memref<2x2x13x15xf32, #tpu.memory_space<vmem>>, vector<2x2x1x1xf32>
    %c0_54 = arith.constant 0 : index
    %c0_55 = arith.constant 0 : index
    %c2_56 = arith.constant 2 : index
    %c2_57 = arith.constant 2 : index
    %17 = vector.load %arg2[%c0_54, %c0_55, %c2_56, %c2_57] : memref<2x2x13x15xf32, #tpu.memory_space<vmem>>, vector<2x2x1x1xf32>
    %c0_58 = arith.constant 0 : index
    %c0_59 = arith.constant 0 : index
    %c2_60 = arith.constant 2 : index
    %c1_61 = arith.constant 1 : index
    %18 = vector.load %arg2[%c0_58, %c0_59, %c2_60, %c1_61] : memref<2x2x13x15xf32, #tpu.memory_space<vmem>>, vector<2x2x1x1xf32>
    %c0_62 = arith.constant 0 : index
    %c0_63 = arith.constant 0 : index
    %c2_64 = arith.constant 2 : index
    %c13_65 = arith.constant 13 : index
    %19 = vector.load %arg2[%c0_62, %c0_63, %c2_64, %c13_65] : memref<2x2x13x15xf32, #tpu.memory_space<vmem>>, vector<2x2x1x1xf32>
    %c0_66 = arith.constant 0 : index
    %c0_67 = arith.constant 0 : index
    %c2_68 = arith.constant 2 : index
    %c12_69 = arith.constant 12 : index
    %20 = vector.load %arg2[%c0_66, %c0_67, %c2_68, %c12_69] : memref<2x2x13x15xf32, #tpu.memory_space<vmem>>, vector<2x2x1x1xf32>
    %21 = tpu.concatenate %16, %17, %18, %15, %19, %20 in 3 : vector<2x2x1x1xf32>, vector<2x2x1x1xf32>, vector<2x2x1x1xf32>, vector<2x2x1x15xf32>, vector<2x2x1x1xf32>, vector<2x2x1x1xf32> -> vector<2x2x1x20xf32>
    %c0_70 = arith.constant 0 : index
    %c0_71 = arith.constant 0 : index
    %c1_72 = arith.constant 1 : index
    %c0_73 = arith.constant 0 : index
    %22 = vector.load %arg2[%c0_70, %c0_71, %c1_72, %c0_73] : memref<2x2x13x15xf32, #tpu.memory_space<vmem>>, vector<2x2x1x15xf32>
    %c0_74 = arith.constant 0 : index
    %c0_75 = arith.constant 0 : index
    %c1_76 = arith.constant 1 : index
    %c3_77 = arith.constant 3 : index
    %23 = vector.load %arg2[%c0_74, %c0_75, %c1_76, %c3_77] : memref<2x2x13x15xf32, #tpu.memory_space<vmem>>, vector<2x2x1x1xf32>
    %c0_78 = arith.constant 0 : index
    %c0_79 = arith.constant 0 : index
    %c1_80 = arith.constant 1 : index
    %c2_81 = arith.constant 2 : index
    %24 = vector.load %arg2[%c0_78, %c0_79, %c1_80, %c2_81] : memref<2x2x13x15xf32, #tpu.memory_space<vmem>>, vector<2x2x1x1xf32>
    %c0_82 = arith.constant 0 : index
    %c0_83 = arith.constant 0 : index
    %c1_84 = arith.constant 1 : index
    %c1_85 = arith.constant 1 : index
    %25 = vector.load %arg2[%c0_82, %c0_83, %c1_84, %c1_85] : memref<2x2x13x15xf32, #tpu.memory_space<vmem>>, vector<2x2x1x1xf32>
    %c0_86 = arith.constant 0 : index
    %c0_87 = arith.constant 0 : index
    %c1_88 = arith.constant 1 : index
    %c13_89 = arith.constant 13 : index
    %26 = vector.load %arg2[%c0_86, %c0_87, %c1_88, %c13_89] : memref<2x2x13x15xf32, #tpu.memory_space<vmem>>, vector<2x2x1x1xf32>
    %c0_90 = arith.constant 0 : index
    %c0_91 = arith.constant 0 : index
    %c1_92 = arith.constant 1 : index
    %c12_93 = arith.constant 12 : index
    %27 = vector.load %arg2[%c0_90, %c0_91, %c1_92, %c12_93] : memref<2x2x13x15xf32, #tpu.memory_space<vmem>>, vector<2x2x1x1xf32>
    %28 = tpu.concatenate %23, %24, %25, %22, %26, %27 in 3 : vector<2x2x1x1xf32>, vector<2x2x1x1xf32>, vector<2x2x1x1xf32>, vector<2x2x1x15xf32>, vector<2x2x1x1xf32>, vector<2x2x1x1xf32> -> vector<2x2x1x20xf32>
    %29 = tpu.concatenate %14, %21, %28 in 2 : vector<2x2x1x20xf32>, vector<2x2x1x20xf32>, vector<2x2x1x20xf32> -> vector<2x2x3x20xf32>
    %c0_94 = arith.constant 0 : index
    %c0_95 = arith.constant 0 : index
    %c0_96 = arith.constant 0 : index
    %c0_97 = arith.constant 0 : index
    %30 = vector.load %arg3[%c0_94, %c0_95, %c0_96, %c0_97] : memref<2x2x18x20xf32, #tpu.memory_space<vmem>>, vector<2x2x3x20xf32>
    tpu.vector_store %arg3[%c0_94, %c0_95, %c0_96, %c0_97], %29 {strides = array<i32>} : memref<2x2x18x20xf32, #tpu.memory_space<vmem>>, vector<2x2x3x20xf32>,
    %c0_98 = arith.constant 0 : index
    %c0_99 = arith.constant 0 : index
    %c11 = arith.constant 11 : index
    %c0_100 = arith.constant 0 : index
    %31 = vector.load %arg2[%c0_98, %c0_99, %c11, %c0_100] : memref<2x2x13x15xf32, #tpu.memory_space<vmem>>, vector<2x2x1x15xf32>
    %c0_101 = arith.constant 0 : index
    %c0_102 = arith.constant 0 : index
    %c11_103 = arith.constant 11 : index
    %c3_104 = arith.constant 3 : index
    %32 = vector.load %arg2[%c0_101, %c0_102, %c11_103, %c3_104] : memref<2x2x13x15xf32, #tpu.memory_space<vmem>>, vector<2x2x1x1xf32>
    %c0_105 = arith.constant 0 : index
    %c0_106 = arith.constant 0 : index
    %c11_107 = arith.constant 11 : index
    %c2_108 = arith.constant 2 : index
    %33 = vector.load %arg2[%c0_105, %c0_106, %c11_107, %c2_108] : memref<2x2x13x15xf32, #tpu.memory_space<vmem>>, vector<2x2x1x1xf32>
    %c0_109 = arith.constant 0 : index
    %c0_110 = arith.constant 0 : index
    %c11_111 = arith.constant 11 : index
    %c1_112 = arith.constant 1 : index
    %34 = vector.load %arg2[%c0_109, %c0_110, %c11_111, %c1_112] : memref<2x2x13x15xf32, #tpu.memory_space<vmem>>, vector<2x2x1x1xf32>
    %c0_113 = arith.constant 0 : index
    %c0_114 = arith.constant 0 : index
    %c11_115 = arith.constant 11 : index
    %c13_116 = arith.constant 13 : index
    %35 = vector.load %arg2[%c0_113, %c0_114, %c11_115, %c13_116] : memref<2x2x13x15xf32, #tpu.memory_space<vmem>>, vector<2x2x1x1xf32>
    %c0_117 = arith.constant 0 : index
    %c0_118 = arith.constant 0 : index
    %c11_119 = arith.constant 11 : index
    %c12_120 = arith.constant 12 : index
    %36 = vector.load %arg2[%c0_117, %c0_118, %c11_119, %c12_120] : memref<2x2x13x15xf32, #tpu.memory_space<vmem>>, vector<2x2x1x1xf32>
    %37 = tpu.concatenate %32, %33, %34, %31, %35, %36 in 3 : vector<2x2x1x1xf32>, vector<2x2x1x1xf32>, vector<2x2x1x1xf32>, vector<2x2x1x15xf32>, vector<2x2x1x1xf32>, vector<2x2x1x1xf32> -> vector<2x2x1x20xf32>
    %c0_121 = arith.constant 0 : index
    %c0_122 = arith.constant 0 : index
    %c10 = arith.constant 10 : index
    %c0_123 = arith.constant 0 : index
    %38 = vector.load %arg2[%c0_121, %c0_122, %c10, %c0_123] : memref<2x2x13x15xf32, #tpu.memory_space<vmem>>, vector<2x2x1x15xf32>
    %c0_124 = arith.constant 0 : index
    %c0_125 = arith.constant 0 : index
    %c10_126 = arith.constant 10 : index
    %c3_127 = arith.constant 3 : index
    %39 = vector.load %arg2[%c0_124, %c0_125, %c10_126, %c3_127] : memref<2x2x13x15xf32, #tpu.memory_space<vmem>>, vector<2x2x1x1xf32>
    %c0_128 = arith.constant 0 : index
    %c0_129 = arith.constant 0 : index
    %c10_130 = arith.constant 10 : index
    %c2_131 = arith.constant 2 : index
    %40 = vector.load %arg2[%c0_128, %c0_129, %c10_130, %c2_131] : memref<2x2x13x15xf32, #tpu.memory_space<vmem>>, vector<2x2x1x1xf32>
    %c0_132 = arith.constant 0 : index
    %c0_133 = arith.constant 0 : index
    %c10_134 = arith.constant 10 : index
    %c1_135 = arith.constant 1 : index
    %41 = vector.load %arg2[%c0_132, %c0_133, %c10_134, %c1_135] : memref<2x2x13x15xf32, #tpu.memory_space<vmem>>, vector<2x2x1x1xf32>
    %c0_136 = arith.constant 0 : index
    %c0_137 = arith.constant 0 : index
    %c10_138 = arith.constant 10 : index
    %c13_139 = arith.constant 13 : index
    %42 = vector.load %arg2[%c0_136, %c0_137, %c10_138, %c13_139] : memref<2x2x13x15xf32, #tpu.memory_space<vmem>>, vector<2x2x1x1xf32>
    %c0_140 = arith.constant 0 : index
    %c0_141 = arith.constant 0 : index
    %c10_142 = arith.constant 10 : index
    %c12_143 = arith.constant 12 : index
    %43 = vector.load %arg2[%c0_140, %c0_141, %c10_142, %c12_143] : memref<2x2x13x15xf32, #tpu.memory_space<vmem>>, vector<2x2x1x1xf32>
    %44 = tpu.concatenate %39, %40, %41, %38, %42, %43 in 3 : vector<2x2x1x1xf32>, vector<2x2x1x1xf32>, vector<2x2x1x1xf32>, vector<2x2x1x15xf32>, vector<2x2x1x1xf32>, vector<2x2x1x1xf32> -> vector<2x2x1x20xf32>
    %45 = tpu.concatenate %37, %44 in 2 : vector<2x2x1x20xf32>, vector<2x2x1x20xf32> -> vector<2x2x2x20xf32>
    %c0_144 = arith.constant 0 : index
    %c0_145 = arith.constant 0 : index
    %c16 = arith.constant 16 : index
    %c0_146 = arith.constant 0 : index
    %46 = vector.load %arg3[%c0_144, %c0_145, %c16, %c0_146] : memref<2x2x18x20xf32, #tpu.memory_space<vmem>>, vector<2x2x2x20xf32>
    tpu.vector_store %arg3[%c0_144, %c0_145, %c16, %c0_146], %45 {strides = array<i32>} : memref<2x2x18x20xf32, #tpu.memory_space<vmem>>, vector<2x2x2x20xf32>,
    return
  }
  func.func @transform_0(%arg0: i32, %arg1: i32) -> (i32, i32, i32, i32) {
    %c0_i32 = arith.constant 0 : i32
    %c0_i32_0 = arith.constant 0 : i32
    %c0_i32_1 = arith.constant 0 : i32
    return %arg0, %arg1, %c0_i32, %c0_i32_0 : i32, i32, i32, i32
  }
  func.func @transform_1(%arg0: i32, %arg1: i32) -> (i32, i32, i32, i32) {
    %c0_i32 = arith.constant 0 : i32
    %c0_i32_0 = arith.constant 0 : i32
    %c0_i32_1 = arith.constant 0 : i32
    return %arg0, %arg1, %c0_i32, %c0_i32_0 : i32, i32, i32, i32
  }
}

</mosaic_0001>

<llo_original>
// kernel: tpu_custom_call.1
$region0: #{tpu_custom_call.1}
  #allocation0 [shape = 'u32[]', space=smem, size = 0x4, offset = 0x4, fixed_abs, tag = 'smem constant byte address 0x4 - core index']
  #allocation1 [shape = 'u32[144,128]{1,0:T(1,128)}', space=vmem, size = 0x12000, scoped, tag = 'internal scratch']
  %s0 = inlined_call_operand.vmem [shape: f32[2,4,13,15], index: 0, kind: input, shape index: {}]
  %s1 = inlined_call_operand.vmem [shape: f32[2,4,18,20], index: 1, kind: output, shape index: {}]
  %s2 = sld [smem:[#allocation0]]
  $region109: #{tpu_custom_call.1} parent=0
    _
  %s4 = ssub.s32 1, %s2
  %s5 = scalar_select 0, %s4, %s2
  $region1: #{tpu_custom_call.1} parent=0
    #allocation2 [shape = 'u8[65536]{0}', space=vmem, size = 0x10000, scoped, tag = 'input window, operand 0']
    #allocation3 [shape = 'u8[98304]{0}', space=vmem, size = 0x18000, scoped, tag = 'output window, operand 0']
    loop: start=0, step=1, limit=4
    $region2: #{tpu_custom_call.1} parent=1 // loop_pre_header
      _
    $region3: #{tpu_custom_call.1} parent=1 // loop_header
      %s7 = sphi 0, %s11
      %p8 = scmp.ge.s32.totalorder %s7, 4
      %s14 = sphi 0, %s26
      %s15 = sphi 0, %s22
      %s16 = sphi 0, %s14
      %s17 = sphi 0, %s15
      %s18 = sphi 0, %s16
      %s19 = sphi 0, %s17
      %s31 = sphi 0, %s33
      %s34 = sphi 0, %s31
      %s35 = sphi 0, %s34
      %s51 = sphi 0, %s35
      %s59 = sphi 0, %s61
      %s62 = sphi 0, %s59
      %s63 = sphi 0, %s62
      %s79 = sphi 0, %s63
    $region4: #{tpu_custom_call.1} parent=1 // loop_header_branch
      %10 = sbr.rel (%p8) target = $region8
    $region5: #{tpu_custom_call.1} parent=1 // loop_body
      %s12 = ssub.s32 %s7, 1
      %s13 = ssub.s32 %s7, 2
      %s20 = sadd.s32 1, %s15
      %p21 = scmp.ge.s32.totalorder %s20, 2
      %s22 = scalar_select %p21, 0, %s20
      %s23 = sadd.s32 1, %s14
      %s24 = scalar_select %p21, %s23, %s14
      %p25 = scmp.ge.s32.totalorder %s24, 1
      %s26 = scalar_select %p25, 0, %s24
      %s27 = ssub.s32 %s14, %s26
      %s28 = ssub.s32 %s15, %s22
      %s29 = sor.u32 %s27, %s28
      %p30 = scmp.eq.s32.totalorder %s29, 0
      %s32 = sadd.s32 %s31, 1
      %s33 = scalar_select %p30, %s31, %s32
      %p36 = pneg %p30
      %p37 = scmp.eq.s32.totalorder %s7, 1
      %p38 = por %p36, %p37
      %p39 = scmp.ne.s32.totalorder %s31, %s34
      %p40 = scmp.eq.s32.totalorder %s7, 0
      %p41 = por %p39, %p40
      %p42 = scmp.ne.s32.totalorder %s31, %s34
      %p43 = scmp.eq.s32.totalorder %s12, 1
      %p44 = por %p42, %p43
      %p45 = scmp.ne.s32.totalorder %s34, %s35
      %p46 = scmp.eq.s32.totalorder %s12, 0
      %p47 = por %p45, %p46
      %p48 = scmp.ne.s32.totalorder %s34, %s35
      %p49 = scmp.eq.s32.totalorder %s13, 1
      %p50 = por %p48, %p49
      %p52 = scmp.ne.s32.totalorder %s35, %s51
      %p53 = scmp.eq.s32.totalorder %s13, 0
      %p54 = por %p52, %p53
      %s55 = ssub.s32 %s14, %s26
      %s56 = ssub.s32 %s15, %s22
      %s57 = sor.u32 %s55, %s56
      %p58 = scmp.eq.s32.totalorder %s57, 0
      %s60 = sadd.s32 %s59, 1
      %s61 = scalar_select %p58, %s59, %s60
      %p64 = pneg %p58
      %p65 = scmp.eq.s32.totalorder %s7, 1
      %p66 = por %p64, %p65
      %p67 = scmp.ne.s32.totalorder %s59, %s62
      %p68 = scmp.eq.s32.totalorder %s7, 0
      %p69 = por %p67, %p68
      %p70 = scmp.ne.s32.totalorder %s59, %s62
      %p71 = scmp.eq.s32.totalorder %s12, 1
      %p72 = por %p70, %p71
      %p73 = scmp.ne.s32.totalorder %s62, %s63
      %p74 = scmp.eq.s32.totalorder %s12, 0
      %p75 = por %p73, %p74
      %p76 = scmp.ne.s32.totalorder %s62, %s63
      %p77 = scmp.eq.s32.totalorder %s13, 1
      %p78 = por %p76, %p77
      %p80 = scmp.ne.s32.totalorder %s63, %s79
      %p81 = scmp.eq.s32.totalorder %s13, 0
      %p82 = por %p80, %p81
      %p83 = scmp.le.s32.totalorder 1, %s7
      %p84 = scmp.lt.s32.totalorder %s7, 3
      %p85 = pnand %p83, %p84
      %p86 = pneg %p85
      // Predicated region
      $region9: #{tpu_custom_call.1} parent=5 // pred_check
        _
      $region10: #{tpu_custom_call.1} parent=5 // pred_check_branch
        %88 = sbr.rel (%p85) target = $region12
      $region11: #{tpu_custom_call.1} parent=5 // pred_region
        %s89 = ssub.s32 %s7, 1
      $region12: #{tpu_custom_call.1} parent=5 // pred_fallthru
        _
      %p90 = scmp.lt.s32.totalorder %s7, 2
      // Predicated region
      $region13: #{tpu_custom_call.1} parent=5 // pred_check
        %p91 = pneg %p90
      $region14: #{tpu_custom_call.1} parent=5 // pred_check_branch
        %93 = sbr.rel (%p91) target = $region16
      $region15: #{tpu_custom_call.1} parent=5 // pred_region
        // Predicated region
        $region17: #{tpu_custom_call.1} parent=15 // pred_check
          %p94 = pneg %p41
        $region18: #{tpu_custom_call.1} parent=15 // pred_check_branch
          %96 = sbr.rel (%p94) target = $region20
        $region19: #{tpu_custom_call.1} parent=15 // pred_region
          %s97 = sand.u32 %s31, 1
          %s98 = sand.u32 %s31, 1
          %s99 = smul.addr %s98, 64
          %s100 = scalar_lea.vmem [#allocation2], %s99
          %s101 = smul.u32 2, %s14
          %s102 = smul.u32 2, %s15
          %s103 = smul.addr %s102, 2
          %s104 = smul.addr %s101, 8
          %s105 = sadd.s32 %s103, %s104
          %s106 = smul.addr %s105, 8
          %s107 = scalar_lea.vmem %s0, %s106
          // Predicated region
          $region21: #{tpu_custom_call.1} parent=19 // pred_check
            _
          $region22: #{tpu_custom_call.1} parent=19 // pred_check_branch
            %109 = sbr.rel (0) target = $region24
          $region23: #{tpu_custom_call.1} parent=19 // pred_region
            // Predicated region
            $region25: #{tpu_custom_call.1} parent=23 // pred_check
              _
            $region26: #{tpu_custom_call.1} parent=23 // pred_check_branch
              %111 = sbr.rel (0) target = $region28
            $region27: #{tpu_custom_call.1} parent=23 // pred_region
              // Predicated region
              $region40: #{tpu_custom_call.1} parent=27 // pred_check
                _
              $region41: #{tpu_custom_call.1} parent=27 // pred_check_branch
                %141 = sbr.rel (0) target = $region43
              $region42: #{tpu_custom_call.1} parent=27 // pred_region
                loop: start=0, step=1, limit=1
                $region44: #{tpu_custom_call.1} parent=42 // loop_pre_header
                  _
                $region45: #{tpu_custom_call.1} parent=42 // loop_header
                  %s143 = sphi 0, %s147
                  %p144 = scmp.ge.s32.totalorder %s143, 1
                  %s148 = sphi %s107, %s107
                  %s149 = sphi %s100, %s100
                $region46: #{tpu_custom_call.1} parent=42 // loop_header_branch
                  %146 = sbr.rel (%p144) target = $region50
                $region47: #{tpu_custom_call.1} parent=42 // loop_body
                  %v150 = vld [vmem:[%s148] sm:$0xff]
                  %151 = vst [vmem:[%s149] sm:$0xff] %v150
                  %v152 = vld [vmem:[%s148 + $0x8] sm:$0xff]
                  %153 = vst [vmem:[%s149 + $0x8] sm:$0xff] %v152
                  %v154 = vld [vmem:[%s148 + $0x10] sm:$0xff]
                  %155 = vst [vmem:[%s149 + $0x10] sm:$0xff] %v154
                  %v156 = vld [vmem:[%s148 + $0x18] sm:$0xff]
                  %157 = vst [vmem:[%s149 + $0x18] sm:$0xff] %v156
                  %v158 = vld [vmem:[%s148 + $0x40] sm:$0xff]
                  %159 = vst [vmem:[%s149 + $0x20] sm:$0xff] %v158
                  %v160 = vld [vmem:[%s148 + $0x48] sm:$0xff]
                  %161 = vst [vmem:[%s149 + $0x28] sm:$0xff] %v160
                  %v162 = vld [vmem:[%s148 + $0x50] sm:$0xff]
                  %163 = vst [vmem:[%s149 + $0x30] sm:$0xff] %v162
                  %v164 = vld [vmem:[%s148 + $0x58] sm:$0xff]
                  %165 = vst [vmem:[%s149 + $0x38] sm:$0xff] %v164
                $region48: #{tpu_custom_call.1} parent=42 // loop_footer
                  %s147 = sadd.s32 1, %s143
                $region49: #{tpu_custom_call.1} parent=42 // loop_footer_branch
                  %142 = sbr.rel target = $region45
                $region50: #{tpu_custom_call.1} parent=42 // loop_exit
                  _
              $region43: #{tpu_custom_call.1} parent=27 // pred_fallthru
                _
              // Predicated region
              $region51: #{tpu_custom_call.1} parent=27 // pred_check
                _
              $region52: #{tpu_custom_call.1} parent=27 // pred_check_branch
                %167 = sbr.rel target = $region54
              $region53: #{tpu_custom_call.1} parent=27 // pred_region
                _
              $region54: #{tpu_custom_call.1} parent=27 // pred_fallthru
                _
            $region28: #{tpu_custom_call.1} parent=23 // pred_fallthru
              _
            // Predicated region
            $region29: #{tpu_custom_call.1} parent=23 // pred_check
              _
            $region30: #{tpu_custom_call.1} parent=23 // pred_check_branch
              %113 = sbr.rel target = $region32
            $region31: #{tpu_custom_call.1} parent=23 // pred_region
              %s115 = ssub.s32 256, 1
              loop: start=0, step=1, limit=1
              $region33: #{tpu_custom_call.1} parent=31 // loop_pre_header
                _
              $region34: #{tpu_custom_call.1} parent=31 // loop_header
                %s117 = sphi 0, %s121
                %p118 = scmp.ge.s32.totalorder %s117, 1
                %s122 = sphi %s107, %s107
                %s123 = sphi %s100, %s100
              $region35: #{tpu_custom_call.1} parent=31 // loop_header_branch
                %120 = sbr.rel (%p118) target = $region39
              $region36: #{tpu_custom_call.1} parent=31 // loop_body
                %v124 = vld [vmem:[%s122] sm:%s115]
                %125 = vst [vmem:[%s123] sm:%s115] %v124
                %v126 = vld [vmem:[%s122 + $0x8] sm:%s115]
                %127 = vst [vmem:[%s123 + $0x8] sm:%s115] %v126
                %v128 = vld [vmem:[%s122 + $0x10] sm:%s115]
                %129 = vst [vmem:[%s123 + $0x10] sm:%s115] %v128
                %v130 = vld [vmem:[%s122 + $0x18] sm:%s115]
                %131 = vst [vmem:[%s123 + $0x18] sm:%s115] %v130
                %v132 = vld [vmem:[%s122 + $0x40] sm:%s115]
                %133 = vst [vmem:[%s123 + $0x20] sm:%s115] %v132
                %v134 = vld [vmem:[%s122 + $0x48] sm:%s115]
                %135 = vst [vmem:[%s123 + $0x28] sm:%s115] %v134
                %v136 = vld [vmem:[%s122 + $0x50] sm:%s115]
                %137 = vst [vmem:[%s123 + $0x30] sm:%s115] %v136
                %v138 = vld [vmem:[%s122 + $0x58] sm:%s115]
                %139 = vst [vmem:[%s123 + $0x38] sm:%s115] %v138
              $region37: #{tpu_custom_call.1} parent=31 // loop_footer
                %s121 = sadd.s32 1, %s117
              $region38: #{tpu_custom_call.1} parent=31 // loop_footer_branch
                %116 = sbr.rel target = $region34
              $region39: #{tpu_custom_call.1} parent=31 // loop_exit
                _
            $region32: #{tpu_custom_call.1} parent=23 // pred_fallthru
              _
          $region24: #{tpu_custom_call.1} parent=19 // pred_fallthru
            _
          %168 = vnop
        $region20: #{tpu_custom_call.1} parent=15 // pred_fallthru
          _
      $region16: #{tpu_custom_call.1} parent=5 // pred_fallthru
        _
      %p169 = scmp.le.s32.totalorder 1, %s7
      %p170 = scmp.lt.s32.totalorder %s7, 3
      %p171 = pnand %p169, %p170
      %p172 = pneg %p171
      // Predicated region
      $region55: #{tpu_custom_call.1} parent=5 // pred_check
        _
      $region56: #{tpu_custom_call.1} parent=5 // pred_check_branch
        %174 = sbr.rel (%p171) target = $region58
      $region57: #{tpu_custom_call.1} parent=5 // pred_region
        %s175 = ssub.s32 %s7, 1
        %s176 = sand.u32 %s34, 1
        %s177 = sand.u32 %s34, 1
        %s178 = smul.addr %s177, 64
        %s179 = scalar_lea.vmem [#allocation2], %s178
        // Predicated region
        $region59: #{tpu_custom_call.1} parent=57 // pred_check
          %p180 = pneg %p47
        $region60: #{tpu_custom_call.1} parent=57 // pred_check_branch
          %182 = sbr.rel (%p180) target = $region62
        $region61: #{tpu_custom_call.1} parent=57 // pred_region
          _
        $region62: #{tpu_custom_call.1} parent=57 // pred_fallthru
          _
        %s183 = sand.u32 %s34, 1
        %s184 = sand.u32 %s34, 1
        %s185 = smul.addr %s184, 64
        %s186 = scalar_lea.vmem [#allocation2], %s185
        %p187 = pneg %p47
        %p188 = pneg %p44
        %p189 = pneg %p75
        %p190 = pneg %p72
        %s191 = sand.u32 %s62, 1
        %s192 = sand.u32 %s62, 1
        %s193 = smul.addr %s192, 96
        %s194 = scalar_lea.vmem [#allocation3], %s193
        %s195 = smul.u32 2, %s16
        %s196 = smul.u32 2, %s17
        %s197 = smul.u32 2, %s16
        %s198 = smul.u32 2, %s17
        %v199 = vld [vmem:[%s179] sm:$0xff]
        %v200 = vld [vmem:[%s179 + $0x8] sm:$0x1f]
        %v201 = vld [vmem:[%s179 + $0x10] sm:$0xff]
        %v202 = vld [vmem:[%s179 + $0x18] sm:$0x1f]
        %v203 = vld [vmem:[%s179 + $0x20] sm:$0xff]
        %v204 = vld [vmem:[%s179 + $0x28] sm:$0x1f]
        %v205 = vld [vmem:[%s179 + $0x30] sm:$0xff]
        %v206 = vld [vmem:[%s179 + $0x38] sm:$0x1f]
        %215 = vrot.lane.b32.xlu0 %v199, 125
        %v216 = vpop.permute.xlu0 %215
        %217 = vrot.lane.b32.xlu0 %v200, 125
        %v218 = vpop.permute.xlu0 %217
        %219 = vrot.lane.b32.xlu0 %v201, 125
        %v220 = vpop.permute.xlu0 %219
        %221 = vrot.lane.b32.xlu0 %v202, 125
        %v222 = vpop.permute.xlu0 %221
        %223 = vrot.lane.b32.xlu0 %v203, 125
        %v224 = vpop.permute.xlu0 %223
        %225 = vrot.lane.b32.xlu0 %v204, 125
        %v226 = vpop.permute.xlu0 %225
        %227 = vrot.lane.b32.xlu0 %v205, 125
        %v228 = vpop.permute.xlu0 %227
        %229 = vrot.lane.b32.xlu0 %v206, 125
        %v230 = vpop.permute.xlu0 %229
        %239 = vrot.lane.b32.xlu0 %v199, 127
        %v240 = vpop.permute.xlu0 %239
        %241 = vrot.lane.b32.xlu0 %v200, 127
        %v242 = vpop.permute.xlu0 %241
        %243 = vrot.lane.b32.xlu0 %v201, 127
        %v244 = vpop.permute.xlu0 %243
        %245 = vrot.lane.b32.xlu0 %v202, 127
        %v246 = vpop.permute.xlu0 %245
        %247 = vrot.lane.b32.xlu0 %v203, 127
        %v248 = vpop.permute.xlu0 %247
        %249 = vrot.lane.b32.xlu0 %v204, 127
        %v250 = vpop.permute.xlu0 %249
        %251 = vrot.lane.b32.xlu0 %v205, 127
        %v252 = vpop.permute.xlu0 %251
        %253 = vrot.lane.b32.xlu0 %v206, 127
        %v254 = vpop.permute.xlu0 %253
        %263 = vrot.lane.b32.xlu0 %v199, 1
        %v264 = vpop.permute.xlu0 %263
        %265 = vrot.lane.b32.xlu0 %v200, 1
        %v266 = vpop.permute.xlu0 %265
        %267 = vrot.lane.b32.xlu0 %v201, 1
        %v268 = vpop.permute.xlu0 %267
        %269 = vrot.lane.b32.xlu0 %v202, 1
        %v270 = vpop.permute.xlu0 %269
        %271 = vrot.lane.b32.xlu0 %v203, 1
        %v272 = vpop.permute.xlu0 %271
        %273 = vrot.lane.b32.xlu0 %v204, 1
        %v274 = vpop.permute.xlu0 %273
        %275 = vrot.lane.b32.xlu0 %v205, 1
        %v276 = vpop.permute.xlu0 %275
        %277 = vrot.lane.b32.xlu0 %v206, 1
        %v278 = vpop.permute.xlu0 %277
        %287 = vrot.lane.b32.xlu0 %v199, 3
        %v288 = vpop.permute.xlu0 %287
        %289 = vrot.lane.b32.xlu0 %v200, 3
        %v290 = vpop.permute.xlu0 %289
        %291 = vrot.lane.b32.xlu0 %v201, 3
        %v292 = vpop.permute.xlu0 %291
        %293 = vrot.lane.b32.xlu0 %v202, 3
        %v294 = vpop.permute.xlu0 %293
        %295 = vrot.lane.b32.xlu0 %v203, 3
        %v296 = vpop.permute.xlu0 %295
        %297 = vrot.lane.b32.xlu0 %v204, 3
        %v298 = vpop.permute.xlu0 %297
        %299 = vrot.lane.b32.xlu0 %v205, 3
        %v300 = vpop.permute.xlu0 %299
        %301 = vrot.lane.b32.xlu0 %v206, 3
        %v302 = vpop.permute.xlu0 %301
        %311 = vrot.lane.b32.xlu0 %v199, 5
        %v312 = vpop.permute.xlu0 %311
        %313 = vrot.lane.b32.xlu0 %v200, 5
        %v314 = vpop.permute.xlu0 %313
        %315 = vrot.lane.b32.xlu0 %v201, 5
        %v316 = vpop.permute.xlu0 %315
        %317 = vrot.lane.b32.xlu0 %v202, 5
        %v318 = vpop.permute.xlu0 %317
        %319 = vrot.lane.b32.xlu0 %v203, 5
        %v320 = vpop.permute.xlu0 %319
        %321 = vrot.lane.b32.xlu0 %v204, 5
        %v322 = vpop.permute.xlu0 %321
        %323 = vrot.lane.b32.xlu0 %v205, 5
        %v324 = vpop.permute.xlu0 %323
        %325 = vrot.lane.b32.xlu0 %v206, 5
        %v326 = vpop.permute.xlu0 %325
        %335 = vrot.lane.b32.xlu0 %v199, 7
        %v336 = vpop.permute.xlu0 %335
        %337 = vrot.lane.b32.xlu0 %v200, 7
        %v338 = vpop.permute.xlu0 %337
        %339 = vrot.lane.b32.xlu0 %v201, 7
        %v340 = vpop.permute.xlu0 %339
        %341 = vrot.lane.b32.xlu0 %v202, 7
        %v342 = vpop.permute.xlu0 %341
        %343 = vrot.lane.b32.xlu0 %v203, 7
        %v344 = vpop.permute.xlu0 %343
        %345 = vrot.lane.b32.xlu0 %v204, 7
        %v346 = vpop.permute.xlu0 %345
        %347 = vrot.lane.b32.xlu0 %v205, 7
        %v348 = vpop.permute.xlu0 %347
        %349 = vrot.lane.b32.xlu0 %v206, 7
        %v350 = vpop.permute.xlu0 %349
        %vm359 = vcmask 7168
        %v360 = vsel %vm359, %v216, %v240
        %v361 = vsel %vm359, %v218, %v242
        %v362 = vsel %vm359, %v220, %v244
        %v363 = vsel %vm359, %v222, %v246
        %v364 = vsel %vm359, %v224, %v248
        %v365 = vsel %vm359, %v226, %v250
        %v366 = vsel %vm359, %v228, %v252
        %v367 = vsel %vm359, %v230, %v254
        %vm368 = vcmask 15360
        %v369 = vsel %vm368, %v360, %v264
        %v370 = vsel %vm368, %v361, %v266
        %v371 = vsel %vm368, %v362, %v268
        %v372 = vsel %vm368, %v363, %v270
        %v373 = vsel %vm368, %v364, %v272
        %v374 = vsel %vm368, %v365, %v274
        %v375 = vsel %vm368, %v366, %v276
        %v376 = vsel %vm368, %v367, %v278
        %vm377 = vcmask 23552
        %v378 = vsel %vm377, %v369, %v288
        %v379 = vsel %vm377, %v370, %v290
        %v380 = vsel %vm377, %v371, %v292
        %v381 = vsel %vm377, %v372, %v294
        %v382 = vsel %vm377, %v373, %v296
        %v383 = vsel %vm377, %v374, %v298
        %v384 = vsel %vm377, %v375, %v300
        %v385 = vsel %vm377, %v376, %v302
        %vm386 = vcmask 146432
        %v387 = vsel %vm386, %v378, %v312
        %v388 = vsel %vm386, %v379, %v314
        %v389 = vsel %vm386, %v380, %v316
        %v390 = vsel %vm386, %v381, %v318
        %v391 = vsel %vm386, %v382, %v320
        %v392 = vsel %vm386, %v383, %v322
        %v393 = vsel %vm386, %v384, %v324
        %v394 = vsel %vm386, %v385, %v326
        %vm395 = vcmask 154624
        %v396 = vsel %vm395, %v387, %v336
        %v397 = vsel %vm395, %v388, %v338
        %v398 = vsel %vm395, %v389, %v340
        %v399 = vsel %vm395, %v390, %v342
        %v400 = vsel %vm395, %v391, %v344
        %v401 = vsel %vm395, %v392, %v346
        %v402 = vsel %vm395, %v393, %v348
        %v403 = vsel %vm395, %v394, %v350
        %vm404 = vcmask 162816
        %405 = vst.msk [vmem:[%s194 + $0x3] sm:$0xff] %vm404, %v396
        %vm406 = vcmask 159744
        %407 = vst.msk [vmem:[%s194 + $0xb] sm:$0x1f] %vm406, %v397
        %408 = vst.msk [vmem:[%s194 + $0x1b] sm:$0xff] %vm404, %v398
        %409 = vst.msk [vmem:[%s194 + $0x23] sm:$0x1f] %vm406, %v399
        %410 = vst.msk [vmem:[%s194 + $0x33] sm:$0xff] %vm404, %v400
        %411 = vst.msk [vmem:[%s194 + $0x3b] sm:$0x1f] %vm406, %v401
        %412 = vst.msk [vmem:[%s194 + $0x4b] sm:$0xff] %vm404, %v402
        %413 = vst.msk [vmem:[%s194 + $0x53] sm:$0x1f] %vm406, %v403
        %v414 = vld [vmem:[%s179 + $0x3] sm:$0x1]
        %v415 = vld [vmem:[%s179 + $0x13] sm:$0x1]
        %v416 = vld [vmem:[%s179 + $0x23] sm:$0x1]
        %v417 = vld [vmem:[%s179 + $0x33] sm:$0x1]
        %422 = vrot.lane.b32.xlu0 %v414, 125
        %v423 = vpop.permute.xlu0 %422
        %424 = vrot.lane.b32.xlu0 %v415, 125
        %v425 = vpop.permute.xlu0 %424
        %426 = vrot.lane.b32.xlu0 %v416, 125
        %v427 = vpop.permute.xlu0 %426
        %428 = vrot.lane.b32.xlu0 %v417, 125
        %v429 = vpop.permute.xlu0 %428
        %434 = vrot.lane.b32.xlu0 %v414, 127
        %v435 = vpop.permute.xlu0 %434
        %436 = vrot.lane.b32.xlu0 %v415, 127
        %v437 = vpop.permute.xlu0 %436
        %438 = vrot.lane.b32.xlu0 %v416, 127
        %v439 = vpop.permute.xlu0 %438
        %440 = vrot.lane.b32.xlu0 %v417, 127
        %v441 = vpop.permute.xlu0 %440
        %446 = vrot.lane.b32.xlu0 %v414, 1
        %v447 = vpop.permute.xlu0 %446
        %448 = vrot.lane.b32.xlu0 %v415, 1
        %v449 = vpop.permute.xlu0 %448
        %450 = vrot.lane.b32.xlu0 %v416, 1
        %v451 = vpop.permute.xlu0 %450
        %452 = vrot.lane.b32.xlu0 %v417, 1
        %v453 = vpop.permute.xlu0 %452
        %458 = vrot.lane.b32.xlu0 %v414, 3
        %v459 = vpop.permute.xlu0 %458
        %460 = vrot.lane.b32.xlu0 %v415, 3
        %v461 = vpop.permute.xlu0 %460
        %462 = vrot.lane.b32.xlu0 %v416, 3
        %v463 = vpop.permute.xlu0 %462
        %464 = vrot.lane.b32.xlu0 %v417, 3
        %v465 = vpop.permute.xlu0 %464
        %470 = vrot.lane.b32.xlu0 %v414, 5
        %v471 = vpop.permute.xlu0 %470
        %472 = vrot.lane.b32.xlu0 %v415, 5
        %v473 = vpop.permute.xlu0 %472
        %474 = vrot.lane.b32.xlu0 %v416, 5
        %v475 = vpop.permute.xlu0 %474
        %476 = vrot.lane.b32.xlu0 %v417, 5
        %v477 = vpop.permute.xlu0 %476
        %482 = vrot.lane.b32.xlu0 %v414, 7
        %v483 = vpop.permute.xlu0 %482
        %484 = vrot.lane.b32.xlu0 %v415, 7
        %v485 = vpop.permute.xlu0 %484
        %486 = vrot.lane.b32.xlu0 %v416, 7
        %v487 = vpop.permute.xlu0 %486
        %488 = vrot.lane.b32.xlu0 %v417, 7
        %v489 = vpop.permute.xlu0 %488
        %v494 = vsel %vm359, %v423, %v435
        %v495 = vsel %vm359, %v425, %v437
        %v496 = vsel %vm359, %v427, %v439
        %v497 = vsel %vm359, %v429, %v441
        %v498 = vsel %vm368, %v494, %v447
        %v499 = vsel %vm368, %v495, %v449
        %v500 = vsel %vm368, %v496, %v451
        %v501 = vsel %vm368, %v497, %v453
        %v502 = vsel %vm377, %v498, %v459
        %v503 = vsel %vm377, %v499, %v461
        %v504 = vsel %vm377, %v500, %v463
        %v505 = vsel %vm377, %v501, %v465
        %v506 = vsel %vm386, %v502, %v471
        %v507 = vsel %vm386, %v503, %v473
        %v508 = vsel %vm386, %v504, %v475
        %v509 = vsel %vm386, %v505, %v477
        %v510 = vsel %vm395, %v506, %v483
        %v511 = vsel %vm395, %v507, %v485
        %v512 = vsel %vm395, %v508, %v487
        %v513 = vsel %vm395, %v509, %v489
        %v514 = vld [vmem:[%s179 + $0x2] sm:$0x1]
        %v515 = vld [vmem:[%s179 + $0x12] sm:$0x1]
        %v516 = vld [vmem:[%s179 + $0x22] sm:$0x1]
        %v517 = vld [vmem:[%s179 + $0x32] sm:$0x1]
        %522 = vrot.lane.b32.xlu0 %v514, 125
        %v523 = vpop.permute.xlu0 %522
        %524 = vrot.lane.b32.xlu0 %v515, 125
        %v525 = vpop.permute.xlu0 %524
        %526 = vrot.lane.b32.xlu0 %v516, 125
        %v527 = vpop.permute.xlu0 %526
        %528 = vrot.lane.b32.xlu0 %v517, 125
        %v529 = vpop.permute.xlu0 %528
        %534 = vrot.lane.b32.xlu0 %v514, 127
        %v535 = vpop.permute.xlu0 %534
        %536 = vrot.lane.b32.xlu0 %v515, 127
        %v537 = vpop.permute.xlu0 %536
        %538 = vrot.lane.b32.xlu0 %v516, 127
        %v539 = vpop.permute.xlu0 %538
        %540 = vrot.lane.b32.xlu0 %v517, 127
        %v541 = vpop.permute.xlu0 %540
        %546 = vrot.lane.b32.xlu0 %v514, 1
        %v547 = vpop.permute.xlu0 %546
        %548 = vrot.lane.b32.xlu0 %v515, 1
        %v549 = vpop.permute.xlu0 %548
        %550 = vrot.lane.b32.xlu0 %v516, 1
        %v551 = vpop.permute.xlu0 %550
        %552 = vrot.lane.b32.xlu0 %v517, 1
        %v553 = vpop.permute.xlu0 %552
        %558 = vrot.lane.b32.xlu0 %v514, 3
        %v559 = vpop.permute.xlu0 %558
        %560 = vrot.lane.b32.xlu0 %v515, 3
        %v561 = vpop.permute.xlu0 %560
        %562 = vrot.lane.b32.xlu0 %v516, 3
        %v563 = vpop.permute.xlu0 %562
        %564 = vrot.lane.b32.xlu0 %v517, 3
        %v565 = vpop.permute.xlu0 %564
        %570 = vrot.lane.b32.xlu0 %v514, 5
        %v571 = vpop.permute.xlu0 %570
        %572 = vrot.lane.b32.xlu0 %v515, 5
        %v573 = vpop.permute.xlu0 %572
        %574 = vrot.lane.b32.xlu0 %v516, 5
        %v575 = vpop.permute.xlu0 %574
        %576 = vrot.lane.b32.xlu0 %v517, 5
        %v577 = vpop.permute.xlu0 %576
        %582 = vrot.lane.b32.xlu0 %v514, 7
        %v583 = vpop.permute.xlu0 %582
        %584 = vrot.lane.b32.xlu0 %v515, 7
        %v585 = vpop.permute.xlu0 %584
        %586 = vrot.lane.b32.xlu0 %v516, 7
        %v587 = vpop.permute.xlu0 %586
        %588 = vrot.lane.b32.xlu0 %v517, 7
        %v589 = vpop.permute.xlu0 %588
        %v594 = vsel %vm359, %v523, %v535
        %v595 = vsel %vm359, %v525, %v537
        %v596 = vsel %vm359, %v527, %v539
        %v597 = vsel %vm359, %v529, %v541
        %v598 = vsel %vm368, %v594, %v547
        %v599 = vsel %vm368, %v595, %v549
        %v600 = vsel %vm368, %v596, %v551
        %v601 = vsel %vm368, %v597, %v553
        %v602 = vsel %vm377, %v598, %v559
        %v603 = vsel %vm377, %v599, %v561
        %v604 = vsel %vm377, %v600, %v563
        %v605 = vsel %vm377, %v601, %v565
        %v606 = vsel %vm386, %v602, %v571
        %v607 = vsel %vm386, %v603, %v573
        %v608 = vsel %vm386, %v604, %v575
        %v609 = vsel %vm386, %v605, %v577
        %v610 = vsel %vm395, %v606, %v583
        %v611 = vsel %vm395, %v607, %v585
        %v612 = vsel %vm395, %v608, %v587
        %v613 = vsel %vm395, %v609, %v589
        %v614 = vld [vmem:[%s179 + $0x1] sm:$0x1]
        %v615 = vld [vmem:[%s179 + $0x11] sm:$0x1]
        %v616 = vld [vmem:[%s179 + $0x21] sm:$0x1]
        %v617 = vld [vmem:[%s179 + $0x31] sm:$0x1]
        %622 = vrot.lane.b32.xlu0 %v614, 125
        %v623 = vpop.permute.xlu0 %622
        %624 = vrot.lane.b32.xlu0 %v615, 125
        %v625 = vpop.permute.xlu0 %624
        %626 = vrot.lane.b32.xlu0 %v616, 125
        %v627 = vpop.permute.xlu0 %626
        %628 = vrot.lane.b32.xlu0 %v617, 125
        %v629 = vpop.permute.xlu0 %628
        %634 = vrot.lane.b32.xlu0 %v614, 127
        %v635 = vpop.permute.xlu0 %634
        %636 = vrot.lane.b32.xlu0 %v615, 127
        %v637 = vpop.permute.xlu0 %636
        %638 = vrot.lane.b32.xlu0 %v616, 127
        %v639 = vpop.permute.xlu0 %638
        %640 = vrot.lane.b32.xlu0 %v617, 127
        %v641 = vpop.permute.xlu0 %640
        %646 = vrot.lane.b32.xlu0 %v614, 1
        %v647 = vpop.permute.xlu0 %646
        %648 = vrot.lane.b32.xlu0 %v615, 1
        %v649 = vpop.permute.xlu0 %648
        %650 = vrot.lane.b32.xlu0 %v616, 1
        %v651 = vpop.permute.xlu0 %650
        %652 = vrot.lane.b32.xlu0 %v617, 1
        %v653 = vpop.permute.xlu0 %652
        %658 = vrot.lane.b32.xlu0 %v614, 3
        %v659 = vpop.permute.xlu0 %658
        %660 = vrot.lane.b32.xlu0 %v615, 3
        %v661 = vpop.permute.xlu0 %660
        %662 = vrot.lane.b32.xlu0 %v616, 3
        %v663 = vpop.permute.xlu0 %662
        %664 = vrot.lane.b32.xlu0 %v617, 3
        %v665 = vpop.permute.xlu0 %664
        %670 = vrot.lane.b32.xlu0 %v614, 5
        %v671 = vpop.permute.xlu0 %670
        %672 = vrot.lane.b32.xlu0 %v615, 5
        %v673 = vpop.permute.xlu0 %672
        %674 = vrot.lane.b32.xlu0 %v616, 5
        %v675 = vpop.permute.xlu0 %674
        %676 = vrot.lane.b32.xlu0 %v617, 5
        %v677 = vpop.permute.xlu0 %676
        %682 = vrot.lane.b32.xlu0 %v614, 7
        %v683 = vpop.permute.xlu0 %682
        %684 = vrot.lane.b32.xlu0 %v615, 7
        %v685 = vpop.permute.xlu0 %684
        %686 = vrot.lane.b32.xlu0 %v616, 7
        %v687 = vpop.permute.xlu0 %686
        %688 = vrot.lane.b32.xlu0 %v617, 7
        %v689 = vpop.permute.xlu0 %688
        %v694 = vsel %vm359, %v623, %v635
        %v695 = vsel %vm359, %v625, %v637
        %v696 = vsel %vm359, %v627, %v639
        %v697 = vsel %vm359, %v629, %v641
        %v698 = vsel %vm368, %v694, %v647
        %v699 = vsel %vm368, %v695, %v649
        %v700 = vsel %vm368, %v696, %v651
        %v701 = vsel %vm368, %v697, %v653
        %v702 = vsel %vm377, %v698, %v659
        %v703 = vsel %vm377, %v699, %v661
        %v704 = vsel %vm377, %v700, %v663
        %v705 = vsel %vm377, %v701, %v665
        %v706 = vsel %vm386, %v702, %v671
        %v707 = vsel %vm386, %v703, %v673
        %v708 = vsel %vm386, %v704, %v675
        %v709 = vsel %vm386, %v705, %v677
        %v710 = vsel %vm395, %v706, %v683
        %v711 = vsel %vm395, %v707, %v685
        %v712 = vsel %vm395, %v708, %v687
        %v713 = vsel %vm395, %v709, %v689
        %v718 = vrot.slane %v610, 7
        %v719 = vrot.slane %v611, 7
        %v720 = vrot.slane %v612, 7
        %v721 = vrot.slane %v613, 7
        %v730 = vrot.slane %v710, 6
        %v731 = vrot.slane %v711, 6
        %v732 = vrot.slane %v712, 6
        %v733 = vrot.slane %v713, 6
        %vm738 = vcmask 1040384
        %v739 = vsel %vm738, %v510, %v718
        %v740 = vsel %vm738, %v511, %v719
        %v741 = vsel %vm738, %v512, %v720
        %v742 = vsel %vm738, %v513, %v721
        %vm743 = vcmask 1041408
        %v744 = vsel %vm743, %v739, %v730
        %v745 = vsel %vm743, %v740, %v731
        %v746 = vsel %vm743, %v741, %v732
        %v747 = vsel %vm743, %v742, %v733
        %vm748 = vcmask 157696
        %749 = vst.msk [vmem:[%s194] sm:$0x7] %vm748, %v744
        %750 = vst.msk [vmem:[%s194 + $0x18] sm:$0x7] %vm748, %v745
        %751 = vst.msk [vmem:[%s194 + $0x30] sm:$0x7] %vm748, %v746
        %752 = vst.msk [vmem:[%s194 + $0x48] sm:$0x7] %vm748, %v747
        %v753 = vld [vmem:[%s179 + $0xb] sm:$0x1]
        %v754 = vld [vmem:[%s179 + $0x1b] sm:$0x1]
        %v755 = vld [vmem:[%s179 + $0x2b] sm:$0x1]
        %v756 = vld [vmem:[%s179 + $0x3b] sm:$0x1]
        %761 = vrot.lane.b32.xlu0 %v753, 125
        %v762 = vpop.permute.xlu0 %761
        %763 = vrot.lane.b32.xlu0 %v754, 125
        %v764 = vpop.permute.xlu0 %763
        %765 = vrot.lane.b32.xlu0 %v755, 125
        %v766 = vpop.permute.xlu0 %765
        %767 = vrot.lane.b32.xlu0 %v756, 125
        %v768 = vpop.permute.xlu0 %767
        %773 = vrot.lane.b32.xlu0 %v753, 127
        %v774 = vpop.permute.xlu0 %773
        %775 = vrot.lane.b32.xlu0 %v754, 127
        %v776 = vpop.permute.xlu0 %775
        %777 = vrot.lane.b32.xlu0 %v755, 127
        %v778 = vpop.permute.xlu0 %777
        %779 = vrot.lane.b32.xlu0 %v756, 127
        %v780 = vpop.permute.xlu0 %779
        %785 = vrot.lane.b32.xlu0 %v753, 1
        %v786 = vpop.permute.xlu0 %785
        %787 = vrot.lane.b32.xlu0 %v754, 1
        %v788 = vpop.permute.xlu0 %787
        %789 = vrot.lane.b32.xlu0 %v755, 1
        %v790 = vpop.permute.xlu0 %789
        %791 = vrot.lane.b32.xlu0 %v756, 1
        %v792 = vpop.permute.xlu0 %791
        %797 = vrot.lane.b32.xlu0 %v753, 3
        %v798 = vpop.permute.xlu0 %797
        %799 = vrot.lane.b32.xlu0 %v754, 3
        %v800 = vpop.permute.xlu0 %799
        %801 = vrot.lane.b32.xlu0 %v755, 3
        %v802 = vpop.permute.xlu0 %801
        %803 = vrot.lane.b32.xlu0 %v756, 3
        %v804 = vpop.permute.xlu0 %803
        %809 = vrot.lane.b32.xlu0 %v753, 5
        %v810 = vpop.permute.xlu0 %809
        %811 = vrot.lane.b32.xlu0 %v754, 5
        %v812 = vpop.permute.xlu0 %811
        %813 = vrot.lane.b32.xlu0 %v755, 5
        %v814 = vpop.permute.xlu0 %813
        %815 = vrot.lane.b32.xlu0 %v756, 5
        %v816 = vpop.permute.xlu0 %815
        %821 = vrot.lane.b32.xlu0 %v753, 7
        %v822 = vpop.permute.xlu0 %821
        %823 = vrot.lane.b32.xlu0 %v754, 7
        %v824 = vpop.permute.xlu0 %823
        %825 = vrot.lane.b32.xlu0 %v755, 7
        %v826 = vpop.permute.xlu0 %825
        %827 = vrot.lane.b32.xlu0 %v756, 7
        %v828 = vpop.permute.xlu0 %827
        %v833 = vsel %vm359, %v762, %v774
        %v834 = vsel %vm359, %v764, %v776
        %v835 = vsel %vm359, %v766, %v778
        %v836 = vsel %vm359, %v768, %v780
        %v837 = vsel %vm368, %v833, %v786
        %v838 = vsel %vm368, %v834, %v788
        %v839 = vsel %vm368, %v835, %v790
        %v840 = vsel %vm368, %v836, %v792
        %v841 = vsel %vm377, %v837, %v798
        %v842 = vsel %vm377, %v838, %v800
        %v843 = vsel %vm377, %v839, %v802
        %v844 = vsel %vm377, %v840, %v804
        %v845 = vsel %vm386, %v841, %v810
        %v846 = vsel %vm386, %v842, %v812
        %v847 = vsel %vm386, %v843, %v814
        %v848 = vsel %vm386, %v844, %v816
        %v849 = vsel %vm395, %v845, %v822
        %v850 = vsel %vm395, %v846, %v824
        %v851 = vsel %vm395, %v847, %v826
        %v852 = vsel %vm395, %v848, %v828
        %v853 = vld [vmem:[%s179 + $0xa] sm:$0x1]
        %v854 = vld [vmem:[%s179 + $0x1a] sm:$0x1]
        %v855 = vld [vmem:[%s179 + $0x2a] sm:$0x1]
        %v856 = vld [vmem:[%s179 + $0x3a] sm:$0x1]
        %861 = vrot.lane.b32.xlu0 %v853, 125
        %v862 = vpop.permute.xlu0 %861
        %863 = vrot.lane.b32.xlu0 %v854, 125
        %v864 = vpop.permute.xlu0 %863
        %865 = vrot.lane.b32.xlu0 %v855, 125
        %v866 = vpop.permute.xlu0 %865
        %867 = vrot.lane.b32.xlu0 %v856, 125
        %v868 = vpop.permute.xlu0 %867
        %873 = vrot.lane.b32.xlu0 %v853, 127
        %v874 = vpop.permute.xlu0 %873
        %875 = vrot.lane.b32.xlu0 %v854, 127
        %v876 = vpop.permute.xlu0 %875
        %877 = vrot.lane.b32.xlu0 %v855, 127
        %v878 = vpop.permute.xlu0 %877
        %879 = vrot.lane.b32.xlu0 %v856, 127
        %v880 = vpop.permute.xlu0 %879
        %885 = vrot.lane.b32.xlu0 %v853, 1
        %v886 = vpop.permute.xlu0 %885
        %887 = vrot.lane.b32.xlu0 %v854, 1
        %v888 = vpop.permute.xlu0 %887
        %889 = vrot.lane.b32.xlu0 %v855, 1
        %v890 = vpop.permute.xlu0 %889
        %891 = vrot.lane.b32.xlu0 %v856, 1
        %v892 = vpop.permute.xlu0 %891
        %897 = vrot.lane.b32.xlu0 %v853, 3
        %v898 = vpop.permute.xlu0 %897
        %899 = vrot.lane.b32.xlu0 %v854, 3
        %v900 = vpop.permute.xlu0 %899
        %901 = vrot.lane.b32.xlu0 %v855, 3
        %v902 = vpop.permute.xlu0 %901
        %903 = vrot.lane.b32.xlu0 %v856, 3
        %v904 = vpop.permute.xlu0 %903
        %909 = vrot.lane.b32.xlu0 %v853, 5
        %v910 = vpop.permute.xlu0 %909
        %911 = vrot.lane.b32.xlu0 %v854, 5
        %v912 = vpop.permute.xlu0 %911
        %913 = vrot.lane.b32.xlu0 %v855, 5
        %v914 = vpop.permute.xlu0 %913
        %915 = vrot.lane.b32.xlu0 %v856, 5
        %v916 = vpop.permute.xlu0 %915
        %921 = vrot.lane.b32.xlu0 %v853, 7
        %v922 = vpop.permute.xlu0 %921
        %923 = vrot.lane.b32.xlu0 %v854, 7
        %v924 = vpop.permute.xlu0 %923
        %925 = vrot.lane.b32.xlu0 %v855, 7
        %v926 = vpop.permute.xlu0 %925
        %927 = vrot.lane.b32.xlu0 %v856, 7
        %v928 = vpop.permute.xlu0 %927
        %v933 = vsel %vm359, %v862, %v874
        %v934 = vsel %vm359, %v864, %v876
        %v935 = vsel %vm359, %v866, %v878
        %v936 = vsel %vm359, %v868, %v880
        %v937 = vsel %vm368, %v933, %v886
        %v938 = vsel %vm368, %v934, %v888
        %v939 = vsel %vm368, %v935, %v890
        %v940 = vsel %vm368, %v936, %v892
        %v941 = vsel %vm377, %v937, %v898
        %v942 = vsel %vm377, %v938, %v900
        %v943 = vsel %vm377, %v939, %v902
        %v944 = vsel %vm377, %v940, %v904
        %v945 = vsel %vm386, %v941, %v910
        %v946 = vsel %vm386, %v942, %v912
        %v947 = vsel %vm386, %v943, %v914
        %v948 = vsel %vm386, %v944, %v916
        %v949 = vsel %vm395, %v945, %v922
        %v950 = vsel %vm395, %v946, %v924
        %v951 = vsel %vm395, %v947, %v926
        %v952 = vsel %vm395, %v948, %v928
        %v957 = vrot.slane %v949, 7
        %v958 = vrot.slane %v950, 7
        %v959 = vrot.slane %v951, 7
        %v960 = vrot.slane %v952, 7
        %v965 = vsel %vm738, %v849, %v957
        %v966 = vsel %vm738, %v850, %v958
        %v967 = vsel %vm738, %v851, %v959
        %v968 = vsel %vm738, %v852, %v960
        %vm969 = vcmask 156672
        %970 = vst.msk [vmem:[%s194 + $0x10] sm:$0x3] %vm969, %v965
        %971 = vst.msk [vmem:[%s194 + $0x28] sm:$0x3] %vm969, %v966
        %972 = vst.msk [vmem:[%s194 + $0x40] sm:$0x3] %vm969, %v967
        %973 = vst.msk [vmem:[%s194 + $0x58] sm:$0x3] %vm969, %v968
        %s974 = sand.u32 %s62, 1
        %s975 = sand.u32 %s62, 1
        %s976 = smul.addr %s975, 96
        %s977 = scalar_lea.vmem [#allocation3], %s976
        // Predicated region
        $region63: #{tpu_custom_call.1} parent=57 // pred_check
          %p978 = pneg %p72
        $region64: #{tpu_custom_call.1} parent=57 // pred_check_branch
          %980 = sbr.rel (%p978) target = $region66
        $region65: #{tpu_custom_call.1} parent=57 // pred_region
          %s981 = smul.u32 2, %s16
          %s982 = smul.u32 2, %s17
          %s983 = smul.addr %s982, 3
          %s984 = smul.addr %s981, 12
          %s985 = sadd.s32 %s983, %s984
          %s986 = smul.addr %s985, 8
          %s987 = scalar_lea.vmem %s1, %s986
          // Predicated region
          $region67: #{tpu_custom_call.1} parent=65 // pred_check
            _
          $region68: #{tpu_custom_call.1} parent=65 // pred_check_branch
            %989 = sbr.rel (0) target = $region70
          $region69: #{tpu_custom_call.1} parent=65 // pred_region
            // Predicated region
            $region71: #{tpu_custom_call.1} parent=69 // pred_check
              _
            $region72: #{tpu_custom_call.1} parent=69 // pred_check_branch
              %991 = sbr.rel (0) target = $region74
            $region73: #{tpu_custom_call.1} parent=69 // pred_region
              // Predicated region
              $region86: #{tpu_custom_call.1} parent=73 // pred_check
                _
              $region87: #{tpu_custom_call.1} parent=73 // pred_check_branch
                %1029 = sbr.rel (0) target = $region89
              $region88: #{tpu_custom_call.1} parent=73 // pred_region
                loop: start=0, step=1, limit=1
                $region90: #{tpu_custom_call.1} parent=88 // loop_pre_header
                  _
                $region91: #{tpu_custom_call.1} parent=88 // loop_header
                  %s1031 = sphi 0, %s1035
                  %p1032 = scmp.ge.s32.totalorder %s1031, 1
                  %s1036 = sphi %s977, %s977
                  %s1037 = sphi %s987, %s987
                $region92: #{tpu_custom_call.1} parent=88 // loop_header_branch
                  %1034 = sbr.rel (%p1032) target = $region96
                $region93: #{tpu_custom_call.1} parent=88 // loop_body
                  %v1038 = vld [vmem:[%s1036] sm:$0xff]
                  %1039 = vst [vmem:[%s1037] sm:$0xff] %v1038
                  %v1040 = vld [vmem:[%s1036 + $0x8] sm:$0xff]
                  %1041 = vst [vmem:[%s1037 + $0x8] sm:$0xff] %v1040
                  %v1042 = vld [vmem:[%s1036 + $0x10] sm:$0xff]
                  %1043 = vst [vmem:[%s1037 + $0x10] sm:$0xff] %v1042
                  %v1044 = vld [vmem:[%s1036 + $0x18] sm:$0xff]
                  %1045 = vst [vmem:[%s1037 + $0x18] sm:$0xff] %v1044
                  %v1046 = vld [vmem:[%s1036 + $0x20] sm:$0xff]
                  %1047 = vst [vmem:[%s1037 + $0x20] sm:$0xff] %v1046
                  %v1048 = vld [vmem:[%s1036 + $0x28] sm:$0xff]
                  %1049 = vst [vmem:[%s1037 + $0x28] sm:$0xff] %v1048
                  %v1050 = vld [vmem:[%s1036 + $0x30] sm:$0xff]
                  %1051 = vst [vmem:[%s1037 + $0x60] sm:$0xff] %v1050
                  %v1052 = vld [vmem:[%s1036 + $0x38] sm:$0xff]
                  %1053 = vst [vmem:[%s1037 + $0x68] sm:$0xff] %v1052
                  %v1054 = vld [vmem:[%s1036 + $0x40] sm:$0xff]
                  %1055 = vst [vmem:[%s1037 + $0x70] sm:$0xff] %v1054
                  %v1056 = vld [vmem:[%s1036 + $0x48] sm:$0xff]
                  %1057 = vst [vmem:[%s1037 + $0x78] sm:$0xff] %v1056
                  %v1058 = vld [vmem:[%s1036 + $0x50] sm:$0xff]
                  %1059 = vst [vmem:[%s1037 + $0x80] sm:$0xff] %v1058
                  %v1060 = vld [vmem:[%s1036 + $0x58] sm:$0xff]
                  %1061 = vst [vmem:[%s1037 + $0x88] sm:$0xff] %v1060
                $region94: #{tpu_custom_call.1} parent=88 // loop_footer
                  %s1035 = sadd.s32 1, %s1031
                $region95: #{tpu_custom_call.1} parent=88 // loop_footer_branch
                  %1030 = sbr.rel target = $region91
                $region96: #{tpu_custom_call.1} parent=88 // loop_exit
                  _
              $region89: #{tpu_custom_call.1} parent=73 // pred_fallthru
                _
              // Predicated region
              $region97: #{tpu_custom_call.1} parent=73 // pred_check
                _
              $region98: #{tpu_custom_call.1} parent=73 // pred_check_branch
                %1063 = sbr.rel target = $region100
              $region99: #{tpu_custom_call.1} parent=73 // pred_region
                _
              $region100: #{tpu_custom_call.1} parent=73 // pred_fallthru
                _
            $region74: #{tpu_custom_call.1} parent=69 // pred_fallthru
              _
            // Predicated region
            $region75: #{tpu_custom_call.1} parent=69 // pred_check
              _
            $region76: #{tpu_custom_call.1} parent=69 // pred_check_branch
              %993 = sbr.rel target = $region78
            $region77: #{tpu_custom_call.1} parent=69 // pred_region
              %s995 = ssub.s32 256, 1
              loop: start=0, step=1, limit=1
              $region79: #{tpu_custom_call.1} parent=77 // loop_pre_header
                _
              $region80: #{tpu_custom_call.1} parent=77 // loop_header
                %s997 = sphi 0, %s1001
                %p998 = scmp.ge.s32.totalorder %s997, 1
                %s1002 = sphi %s977, %s977
                %s1003 = sphi %s987, %s987
              $region81: #{tpu_custom_call.1} parent=77 // loop_header_branch
                %1000 = sbr.rel (%p998) target = $region85
              $region82: #{tpu_custom_call.1} parent=77 // loop_body
                %v1004 = vld [vmem:[%s1002] sm:%s995]
                %1005 = vst [vmem:[%s1003] sm:%s995] %v1004
                %v1006 = vld [vmem:[%s1002 + $0x8] sm:%s995]
                %1007 = vst [vmem:[%s1003 + $0x8] sm:%s995] %v1006
                %v1008 = vld [vmem:[%s1002 + $0x10] sm:%s995]
                %1009 = vst [vmem:[%s1003 + $0x10] sm:%s995] %v1008
                %v1010 = vld [vmem:[%s1002 + $0x18] sm:%s995]
                %1011 = vst [vmem:[%s1003 + $0x18] sm:%s995] %v1010
                %v1012 = vld [vmem:[%s1002 + $0x20] sm:%s995]
                %1013 = vst [vmem:[%s1003 + $0x20] sm:%s995] %v1012
                %v1014 = vld [vmem:[%s1002 + $0x28] sm:%s995]
                %1015 = vst [vmem:[%s1003 + $0x28] sm:%s995] %v1014
                %v1016 = vld [vmem:[%s1002 + $0x30] sm:%s995]
                %1017 = vst [vmem:[%s1003 + $0x60] sm:%s995] %v1016
                %v1018 = vld [vmem:[%s1002 + $0x38] sm:%s995]
                %1019 = vst [vmem:[%s1003 + $0x68] sm:%s995] %v1018
                %v1020 = vld [vmem:[%s1002 + $0x40] sm:%s995]
                %1021 = vst [vmem:[%s1003 + $0x70] sm:%s995] %v1020
                %v1022 = vld [vmem:[%s1002 + $0x48] sm:%s995]
                %1023 = vst [vmem:[%s1003 + $0x78] sm:%s995] %v1022
                %v1024 = vld [vmem:[%s1002 + $0x50] sm:%s995]
                %1025 = vst [vmem:[%s1003 + $0x80] sm:%s995] %v1024
                %v1026 = vld [vmem:[%s1002 + $0x58] sm:%s995]
                %1027 = vst [vmem:[%s1003 + $0x88] sm:%s995] %v1026
              $region83: #{tpu_custom_call.1} parent=77 // loop_footer
                %s1001 = sadd.s32 1, %s997
              $region84: #{tpu_custom_call.1} parent=77 // loop_footer_branch
                %996 = sbr.rel target = $region80
              $region85: #{tpu_custom_call.1} parent=77 // loop_exit
                _
            $region78: #{tpu_custom_call.1} parent=69 // pred_fallthru
              _
          $region70: #{tpu_custom_call.1} parent=65 // pred_fallthru
            _
          %1064 = vnop
        $region66: #{tpu_custom_call.1} parent=57 // pred_fallthru
          _
      $region58: #{tpu_custom_call.1} parent=5 // pred_fallthru
        _
      %p1065 = scmp.le.s32.totalorder 2, %s7
      // Predicated region
      $region101: #{tpu_custom_call.1} parent=5 // pred_check
        %p1066 = pneg %p1065
      $region102: #{tpu_custom_call.1} parent=5 // pred_check_branch
        %1068 = sbr.rel (%p1066) target = $region104
      $region103: #{tpu_custom_call.1} parent=5 // pred_region
        %s1069 = ssub.s32 %s7, 2
        // Predicated region
        $region105: #{tpu_custom_call.1} parent=103 // pred_check
          %p1070 = pneg %p78
        $region106: #{tpu_custom_call.1} parent=103 // pred_check_branch
          %1072 = sbr.rel (%p1070) target = $region108
        $region107: #{tpu_custom_call.1} parent=103 // pred_region
          %s1073 = sand.u32 %s63, 1
          %s1074 = sand.u32 %s63, 1
          %s1075 = smul.addr %s1074, 96
          %s1076 = scalar_lea.vmem [#allocation3], %s1075
        $region108: #{tpu_custom_call.1} parent=103 // pred_fallthru
          _
      $region104: #{tpu_custom_call.1} parent=5 // pred_fallthru
        _
    $region6: #{tpu_custom_call.1} parent=1 // loop_footer
      %s11 = sadd.s32 1, %s7
    $region7: #{tpu_custom_call.1} parent=1 // loop_footer_branch
      %6 = sbr.rel target = $region3
    $region8: #{tpu_custom_call.1} parent=1 // loop_exit
      _

</llo_original>
